<compile_context>
chip_gen: v7x
topology: tpu7x:2x2x1
jax: 0.10.0
libtpu: 0.0.40
codegen_flags: <defaults>
</compile_context>

<pallas_src>
import functools

import jax
import jax.numpy as jnp
from jax.experimental import pallas as pl
from jax.experimental.pallas import tpu as pltpu

FEAT = 128          # lane-aligned feature width for the hidden/head layers
H1, H2 = 50, 30     # logical hidden sizes (live inside the padded 128 lanes)


def _round_up(n, m):
    return ((n + m - 1) // m) * m


def actor_critic_kernel(x_ref, w1_ref, w23_ref, b_ref, out_ref, *, n_actions):
    x = x_ref[...]                                   # (TM, obs_pad) bf16
    b = b_ref[...]                                   # (8, 128) f32

    # Layer 1: Linear(obs -> 50) + ReLU. bf16 operands, f32 accumulation.
    h1 = jnp.dot(x, w1_ref[...], preferred_element_type=jnp.float32) + b[0:1, :]
    h1 = jnp.maximum(h1, 0.0)

    # Layer 2: Linear(50 -> 30) + ReLU.
    h2 = jnp.dot(h1.astype(jnp.bfloat16), w23_ref[0],
                 preferred_element_type=jnp.float32) + b[1:2, :]
    h2 = jnp.maximum(h2, 0.0)

    # Fused heads: lanes [0:A] = policy logits, lane A = value logit, rest padding.
    z = jnp.dot(h2.astype(jnp.bfloat16), w23_ref[1],
                preferred_element_type=jnp.float32) + b[2:3, :]

    lane = jax.lax.broadcasted_iota(jnp.int32, z.shape, 1)
    is_policy = lane < n_actions
    is_value = lane == n_actions

    # Softmax over the policy lanes only (padded lanes masked out of max/sum).
    logits = jnp.where(is_policy, z, jnp.float32(-1e30))
    m = jnp.max(logits, axis=-1, keepdims=True)
    e = jnp.where(is_policy, jnp.exp(logits - m), 0.0)
    inv_sum = pl.reciprocal(jnp.sum(e, axis=-1, keepdims=True), approx=True)
    probs = e * inv_sum                              # zero off the policy lanes

    # Isolate the value logit to one column before tanh (EUP work /128).
    v_logit = jnp.sum(jnp.where(is_value, z, 0.0), axis=-1, keepdims=True)  # (TM,1)
    value = jnp.tanh(v_logit)

    # probs is zero at/after lane A, so a single add + lane-select suffices.
    out = probs + jnp.where(is_value, value, 0.0)
    out_ref[...] = out.astype(out_ref.dtype)         # bf16 store, full-lane dense


def pack_params(params, obs_size, n_actions):
    """Pack/cast weights ONCE at init time (hoisted out of the per-call path)."""
    assert obs_size <= FEAT and n_actions + 1 <= FEAT
    obs_pad = _round_up(max(obs_size, 16), 16)       # narrow input stripe, bf16-tile aligned

    w1 = jnp.zeros((obs_pad, FEAT), jnp.float32).at[:obs_size, :H1].set(params["w1"])

    w23 = jnp.zeros((2, FEAT, FEAT), jnp.float32)
    w23 = w23.at[0, :H1, :H2].set(params["w2"])
    w23 = w23.at[1, :H2, :n_actions].set(params["wp"])
    w23 = w23.at[1, :H2, n_actions].set(params["wv"][:, 0])

    bias = jnp.zeros((8, FEAT), jnp.float32)         # rows 0/1/2 = b1 / b2 / [bp|bv]
    bias = bias.at[0, :H1].set(params["b1"][0])
    bias = bias.at[1, :H2].set(params["b2"][0])
    bias = bias.at[2, :n_actions].set(params["bp"][0])
    bias = bias.at[2, n_actions].set(params["bv"][0, 0])

    return dict(
        w1=w1.astype(jnp.bfloat16),                  # (obs_pad, 128) bf16
        w23=w23.astype(jnp.bfloat16),                # (2, 128, 128)  bf16
        bias=bias,                                   # (8, 128)       f32
        obs_size=obs_size, obs_pad=obs_pad, n_actions=n_actions,
    )


def actor_critic_forward(x, packed, *, block_m=2048):
    """x: (B, obs) f32. packed: output of pack_params().

    Returns (action_probs (B, n_actions) f32, value (B, 1) f32).
    """
    B, obs = x.shape
    n_actions = packed["n_actions"]
    obs_pad = packed["obs_pad"]
    assert obs == packed["obs_size"]

    # Batch tile: multiple of 16 sublanes (bf16-friendly), capped at block_m, and
    # capped at ceil(B/2) so large batches produce >=2 grid steps (feeds both
    # v7x TensorCores via the "parallel" axis).
    tm = _round_up(max(16, min(block_m, pl.cdiv(B, 2))), 16)
    Bp = _round_up(B, tm)

    # Narrow bf16 input stripe (zero padding is mathematically inert).
    xp = jnp.zeros((Bp, obs_pad), jnp.bfloat16).at[:B, :obs].set(x.astype(jnp.bfloat16))

    w1, w23, bias = packed["w1"], packed["w23"], packed["bias"]

    grid = (Bp // tm,)
    nbytes = (xp.size * xp.dtype.itemsize + w1.size * w1.dtype.itemsize
              + w23.size * w23.dtype.itemsize + bias.size * bias.dtype.itemsize
              + Bp * FEAT * 2)                       # bf16 output slab
    cost = pl.CostEstimate(
        flops=2 * Bp * FEAT * (obs_pad + 2 * FEAT),
        transcendentals=Bp * (FEAT + 2),             # full-width exp + tanh + recip per row
        bytes_accessed=nbytes,
    )

    out = pl.pallas_call(
        functools.partial(actor_critic_kernel, n_actions=n_actions),
        out_shape=jax.ShapeDtypeStruct((Bp, FEAT), jnp.bfloat16),
        grid_spec=pltpu.PrefetchScalarGridSpec(
            num_scalar_prefetch=0,
            grid=grid,
            in_specs=[
                pl.BlockSpec((tm, obs_pad), lambda i: (i, 0)),        # x tiles (narrow, bf16)
                pl.BlockSpec((obs_pad, FEAT), lambda i: (0, 0)),      # W1 (resident)
                pl.BlockSpec((2, FEAT, FEAT), lambda i: (0, 0, 0)),   # W2 / [Wp|Wv] (resident)
                pl.BlockSpec((8, FEAT), lambda i: (0, 0)),            # biases (resident)
            ],
            out_specs=pl.BlockSpec((tm, FEAT), lambda i: (i, 0)),     # lane-dense bf16 slab
        ),
        compiler_params=pltpu.CompilerParams(
            dimension_semantics=("parallel",),
            # NOTE: per-step VMEM at tm=2048 is only a few MiB; if block_m is ever
            # swept past ~8192, set vmem_limit_bytes explicitly and re-derive the
            # footprint against v7x's 64 MiB physical / 32 MiB scoped budget.
        ),
        cost_estimate=cost,
    )(xp, w1, w23, bias)

    action = out[:B, :n_actions].astype(jnp.float32)
    value = out[:B, n_actions:n_actions + 1].astype(jnp.float32)
    return action, value


def init_params(key, obs_size, n_actions):
    """Deterministic init mimicking torch.nn.Linear default (uniform +-1/sqrt(fan_in))."""
    def linear(k, fan_in, fan_out):
        kw, kb = jax.random.split(k)
        bound = 1.0 / jnp.sqrt(jnp.float32(fan_in))
        w = jax.random.uniform(kw, (fan_in, fan_out), jnp.float32, -bound, bound)
        b = jax.random.uniform(kb, (1, fan_out), jnp.float32, -bound, bound)
        return w, b

    k1, k2, k3, k4 = jax.random.split(key, 4)
    w1, b1 = linear(k1, obs_size, H1)
    w2, b2 = linear(k2, H1, H2)
    wp, bp = linear(k3, H2, n_actions)
    wv, bv = linear(k4, H2, 1)
    return dict(w1=w1, b1=b1, w2=w2, b2=b2, wp=wp, bp=bp, wv=wv, bv=bv)


def reference_forward(x, p):
    h1 = jnp.maximum(x @ p["w1"] + p["b1"], 0.0)
    h2 = jnp.maximum(h1 @ p["w2"] + p["b2"], 0.0)
    action = jax.nn.softmax(h2 @ p["wp"] + p["bp"], axis=1)
    value = jnp.tanh(h2 @ p["wv"] + p["bv"])
    return action, value


if __name__ == "__main__":
    key = jax.random.PRNGKey(0)
    kx, kp = jax.random.split(key)

    # Small env-like shapes: observation_size=4 (e.g. CartPole), n_actions=2, batch=2.
    B, OBS, N_ACT = 2, 4, 2
    x = jax.random.normal(kx, (B, OBS), jnp.float32)
    params = init_params(kp, OBS, N_ACT)

    packed = pack_params(params, OBS, N_ACT)   # done ONCE at init, not per forward
    action, value = actor_critic_forward(x, packed)
    jax.block_until_ready((action, value))

    # Sanity-check against a pure-JAX f32 reference (tolerance loosened for the
    # bf16 matmul inputs / bf16 output slab / approx reciprocal).
    ref_action, ref_value = reference_forward(x, params)
    assert action.shape == (B, N_ACT) and value.shape == (B, 1)
    assert jnp.allclose(action, ref_action, atol=2e-2), "action mismatch"
    assert jnp.allclose(value, ref_value, atol=2e-2), "value mismatch"
    assert jnp.allclose(jnp.sum(action, axis=1), 1.0, atol=2e-2), "softmax rows must sum to 1"

    print("KERNEL_OK")
</pallas_src>

<mosaic_0001>
module attributes {stable_mosaic.version = 11 : i64} {
  func.func @actor_critic_kernel(%arg0: i32, %arg1: memref<16x16xbf16, #tpu.memory_space<vmem>>, %arg2: memref<16x128xbf16, #tpu.memory_space<vmem>>, %arg3: memref<2x128x128xbf16, #tpu.memory_space<vmem>>, %arg4: memref<8x128xf32, #tpu.memory_space<vmem>>, %arg5: memref<16x128xbf16, #tpu.memory_space<vmem>>) attributes {dimension_semantics = [#tpu.dimension_semantics<parallel>], iteration_bounds = array<i64: 1>, scalar_prefetch = 0 : i64, scratch_operands = 0 : i64, tpu.core_type = #tpu.core_type<tc>, window_params = [{transform_indices = @transform_0, window_bounds = array<i64: 16, 16>}, {pipeline_mode = #tpu.pipeline_mode<synchronous>, transform_indices = @transform_1, window_bounds = array<i64: 16, 128>}, {pipeline_mode = #tpu.pipeline_mode<synchronous>, transform_indices = @transform_2, window_bounds = array<i64: 2, 128, 128>}, {pipeline_mode = #tpu.pipeline_mode<synchronous>, transform_indices = @transform_3, window_bounds = array<i64: 8, 128>}, {transform_indices = @transform_4, window_bounds = array<i64: 16, 128>}]} {
    %c0 = arith.constant 0 : index
    %c0_0 = arith.constant 0 : index
    %0 = vector.load %arg1[%c0, %c0_0] : memref<16x16xbf16, #tpu.memory_space<vmem>>, vector<16x16xbf16>
    %c0_1 = arith.constant 0 : index
    %c0_2 = arith.constant 0 : index
    %1 = vector.load %arg4[%c0_1, %c0_2] : memref<8x128xf32, #tpu.memory_space<vmem>>, vector<8x128xf32>
    %c0_3 = arith.constant 0 : index
    %c0_4 = arith.constant 0 : index
    %2 = vector.load %arg2[%c0_3, %c0_4] : memref<16x128xbf16, #tpu.memory_space<vmem>>, vector<16x128xbf16>
    %cst = arith.constant dense<0.000000e+00> : vector<16x128xf32>
    %3 = tpu.matmul %0, %2, %cst {dimension_numbers = #tpu.dot_dimension_numbers<[1], [0], [0], [1], [0, 0, 1, 1], [], []>} : vector<16x16xbf16>, vector<16x128xbf16>, vector<16x128xf32> -> vector<16x128xf32>
    %4 = vector.extract_strided_slice %1 {offsets = [0, 0], sizes = [1, 128], strides = [1, 1]} : vector<8x128xf32> to vector<1x128xf32>
    %5 = vector.broadcast %4 : vector<1x128xf32> to vector<16x128xf32>
    %6 = arith.addf %3, %5 : vector<16x128xf32>
    %cst_5 = arith.constant 0.000000e+00 : f32
    %7 = vector.broadcast %cst_5 : f32 to vector<16x128xf32>
    %8 = arith.maximumf %6, %7 : vector<16x128xf32>
    %9 = arith.truncf %8 : vector<16x128xf32> to vector<16x128xbf16>
    %c0_6 = arith.constant 0 : index
    %c0_7 = arith.constant 0 : index
    %c0_8 = arith.constant 0 : index
    %10 = vector.load %arg3[%c0_6, %c0_7, %c0_8] : memref<2x128x128xbf16, #tpu.memory_space<vmem>>, vector<1x128x128xbf16>
    %11 = vector.shape_cast %10 : vector<1x128x128xbf16> to vector<128x128xbf16>
    %cst_9 = arith.constant dense<0.000000e+00> : vector<16x128xf32>
    %12 = tpu.matmul %9, %11, %cst_9 {dimension_numbers = #tpu.dot_dimension_numbers<[1], [0], [0], [1], [0, 0, 1, 1], [], []>} : vector<16x128xbf16>, vector<128x128xbf16>, vector<16x128xf32> -> vector<16x128xf32>
    %13 = vector.extract_strided_slice %1 {offsets = [1, 0], sizes = [1, 128], strides = [1, 1]} : vector<8x128xf32> to vector<1x128xf32>
    %14 = vector.broadcast %13 : vector<1x128xf32> to vector<16x128xf32>
    %15 = arith.addf %12, %14 : vector<16x128xf32>
    %cst_10 = arith.constant 0.000000e+00 : f32
    %16 = vector.broadcast %cst_10 : f32 to vector<16x128xf32>
    %17 = arith.maximumf %15, %16 : vector<16x128xf32>
    %18 = arith.truncf %17 : vector<16x128xf32> to vector<16x128xbf16>
    %c1 = arith.constant 1 : index
    %c0_11 = arith.constant 0 : index
    %c0_12 = arith.constant 0 : index
    %19 = vector.load %arg3[%c1, %c0_11, %c0_12] : memref<2x128x128xbf16, #tpu.memory_space<vmem>>, vector<1x128x128xbf16>
    %20 = vector.shape_cast %19 : vector<1x128x128xbf16> to vector<128x128xbf16>
    %cst_13 = arith.constant dense<0.000000e+00> : vector<16x128xf32>
    %21 = tpu.matmul %18, %20, %cst_13 {dimension_numbers = #tpu.dot_dimension_numbers<[1], [0], [0], [1], [0, 0, 1, 1], [], []>} : vector<16x128xbf16>, vector<128x128xbf16>, vector<16x128xf32> -> vector<16x128xf32>
    %22 = vector.extract_strided_slice %1 {offsets = [2, 0], sizes = [1, 128], strides = [1, 1]} : vector<8x128xf32> to vector<1x128xf32>
    %23 = vector.broadcast %22 : vector<1x128xf32> to vector<16x128xf32>
    %24 = arith.addf %21, %23 : vector<16x128xf32>
    %25 = tpu.iota {dimensions = array<i32: 1>} : vector<16x128xi32>
    %c2_i32 = arith.constant 2 : i32
    %26 = vector.broadcast %c2_i32 : i32 to vector<16x128xi32>
    %27 = arith.cmpi slt, %25, %26 : vector<16x128xi32>
    %c2_i32_14 = arith.constant 2 : i32
    %28 = vector.broadcast %c2_i32_14 : i32 to vector<16x128xi32>
    %29 = arith.cmpi eq, %25, %28 : vector<16x128xi32>
    %cst_15 = arith.constant -1.000000e+30 : f32
    %30 = vector.broadcast %cst_15 : f32 to vector<16x128xf32>
    %31 = arith.select %27, %24, %30 : vector<16x128xi1>, vector<16x128xf32>
    %cst_16 = arith.constant dense<0xFF800000> : vector<16xf32>
    %32 = vector.multi_reduction <maximumf>, %31, %cst_16 [1] : vector<16x128xf32> to vector<16xf32>
    %33 = vector.shape_cast %32 : vector<16xf32> to vector<16x1xf32>
    %34 = vector.broadcast %33 : vector<16x1xf32> to vector<16x128xf32>
    %35 = arith.subf %31, %34 : vector<16x128xf32>
    %36 = math.exp %35 : vector<16x128xf32>
    %cst_17 = arith.constant 0.000000e+00 : f32
    %37 = vector.broadcast %cst_17 : f32 to vector<16x128xf32>
    %38 = arith.select %27, %36, %37 : vector<16x128xi1>, vector<16x128xf32>
    %cst_18 = arith.constant dense<0.000000e+00> : vector<16xf32>
    %39 = vector.multi_reduction <add>, %38, %cst_18 [1] : vector<16x128xf32> to vector<16xf32>
    %40 = vector.shape_cast %39 : vector<16xf32> to vector<16x1xf32>
    %41 = tpu.reciprocal %40 {approx = true} : vector<16x1xf32> -> vector<16x1xf32>
    %42 = vector.broadcast %41 : vector<16x1xf32> to vector<16x128xf32>
    %43 = arith.mulf %38, %42 : vector<16x128xf32>
    %cst_19 = arith.constant 0.000000e+00 : f32
    %44 = vector.broadcast %cst_19 : f32 to vector<16x128xf32>
    %45 = arith.select %29, %24, %44 : vector<16x128xi1>, vector<16x128xf32>
    %cst_20 = arith.constant dense<0.000000e+00> : vector<16xf32>
    %46 = vector.multi_reduction <add>, %45, %cst_20 [1] : vector<16x128xf32> to vector<16xf32>
    %47 = vector.shape_cast %46 : vector<16xf32> to vector<16x1xf32>
    %48 = math.tanh %47 : vector<16x1xf32>
    %cst_21 = arith.constant 0.000000e+00 : f32
    %49 = vector.shape_cast %48 : vector<16x1xf32> to vector<16x1xf32>
    %50 = vector.broadcast %49 : vector<16x1xf32> to vector<16x128xf32>
    %51 = vector.broadcast %cst_21 : f32 to vector<16x128xf32>
    %52 = arith.select %29, %50, %51 : vector<16x128xi1>, vector<16x128xf32>
    %53 = arith.addf %43, %52 : vector<16x128xf32>
    %54 = arith.truncf %53 : vector<16x128xf32> to vector<16x128xbf16>
    %c0_22 = arith.constant 0 : index
    %c0_23 = arith.constant 0 : index
    %55 = vector.load %arg5[%c0_22, %c0_23] : memref<16x128xbf16, #tpu.memory_space<vmem>>, vector<16x128xbf16>
    tpu.vector_store %arg5[%c0_22, %c0_23], %54 {strides = array<i32>} : memref<16x128xbf16, #tpu.memory_space<vmem>>, vector<16x128xbf16>,
    return
  }
  func.func @transform_0(%arg0: i32) -> (i32, i32) {
    %c0_i32 = arith.constant 0 : i32
    %c0_i32_0 = arith.constant 0 : i32
    return %arg0, %c0_i32 : i32, i32
  }
  func.func @transform_1(%arg0: i32) -> (i32, i32) {
    %c0_i32 = arith.constant 0 : i32
    %c0_i32_0 = arith.constant 0 : i32
    %c0_i32_1 = arith.constant 0 : i32
    return %c0_i32, %c0_i32_0 : i32, i32
  }
  func.func @transform_2(%arg0: i32) -> (i32, i32, i32) {
    %c0_i32 = arith.constant 0 : i32
    %c0_i32_0 = arith.constant 0 : i32
    %c0_i32_1 = arith.constant 0 : i32
    %c0_i32_2 = arith.constant 0 : i32
    return %c0_i32, %c0_i32_0, %c0_i32_1 : i32, i32, i32
  }
  func.func @transform_3(%arg0: i32) -> (i32, i32) {
    %c0_i32 = arith.constant 0 : i32
    %c0_i32_0 = arith.constant 0 : i32
    %c0_i32_1 = arith.constant 0 : i32
    return %c0_i32, %c0_i32_0 : i32, i32
  }
  func.func @transform_4(%arg0: i32) -> (i32, i32) {
    %c0_i32 = arith.constant 0 : i32
    %c0_i32_0 = arith.constant 0 : i32
    return %arg0, %c0_i32 : i32, i32
  }
}

</mosaic_0001>

<llo_original>
// kernel: tpu_custom_call.1
$region0: #{tpu_custom_call.1}
  #allocation0 [shape = 'u32[]', space=smem, size = 0x4, offset = 0x4, fixed_abs, tag = 'smem constant byte address 0x4 - core index']
  #allocation1 [shape = 'u32[144,128]{1,0:T(1,128)}', space=vmem, size = 0x12000, scoped, tag = 'internal scratch']
  %s0 = inlined_call_operand.hbm [shape: bf16[16,16], index: 0, kind: input, shape index: {}]
  %s1 = inlined_call_operand.hbm [shape: bf16[16,128], index: 1, kind: input, shape index: {}]
  %s2 = inlined_call_operand.hbm [shape: bf16[2,128,128], index: 2, kind: input, shape index: {}]
  %s3 = inlined_call_operand.vmem [shape: f32[8,128], index: 3, kind: input, shape index: {}]
  %s4 = inlined_call_operand.hbm [shape: bf16[16,128], index: 4, kind: output, shape index: {}]
  %s5 = sld [smem:[#allocation0]]
  $region38: #{tpu_custom_call.1} parent=0
    _
  %s7 = ssub.s32 1, %s5
  %s8 = scalar_select 0, %s7, %s5
  $region1: #{tpu_custom_call.1} parent=0
    #allocation2 [shape = 'u8[4096]{0}', space=vmem, size = 0x1000, scoped, tag = 'input window, operand 0, single buffered']
    #allocation3 [shape = 's32[1]{0}', space=sflag, size = 0x4, scoped, tag = 'scoped memory for tpu_custom_call.1']
    #allocation4 [shape = 's32[1]{0}', space=sflag, size = 0x4, scoped, tag = 'scoped memory for tpu_custom_call.1']
    #allocation5 [shape = 'u8[4096]{0}', space=vmem, size = 0x1000, scoped, tag = 'input window, operand 1, single buffered']
    #allocation6 [shape = 's32[1]{0}', space=sflag, size = 0x4, scoped, tag = 'scoped memory for tpu_custom_call.1']
    #allocation7 [shape = 'u8[65536]{0}', space=vmem, size = 0x10000, scoped, tag = 'input window, operand 2, single buffered']
    #allocation8 [shape = 'u8[4096]{0}', space=vmem, size = 0x1000, scoped, tag = 'output window, operand 0, single buffered']
    %9 = vsyncpa [#allocation3], 0
    %10 = vsyncpa [#allocation6], 0
    %11 = vsyncpa [#allocation4], 0
    // Predicated region
    $region2: #{tpu_custom_call.1} parent=1 // pred_check
      _
    $region3: #{tpu_custom_call.1} parent=1 // pred_check_branch
      %13 = sbr.rel (0) target = $region5
    $region4: #{tpu_custom_call.1} parent=1 // pred_region
      %s15 = ssub.s32 128, 128
      %16 = vsyncadd [#allocation3], %s15
      %s17 = sshll.u32 [#allocation2], 4
      %s18 = int_to_ptr.vmem [resolvable:$true] %s17
      %23 = dma.hbm_to_vmem [thread:$0]  %s0, 128, %s18, [#allocation3], 64, 64, 4
    $region5: #{tpu_custom_call.1} parent=1 // pred_fallthru
      _
    // Predicated region
    $region6: #{tpu_custom_call.1} parent=1 // pred_check
      _
    $region7: #{tpu_custom_call.1} parent=1 // pred_check_branch
      %25 = sbr.rel (0) target = $region9
    $region8: #{tpu_custom_call.1} parent=1 // pred_region
      %s27 = ssub.s32 128, 128
      %28 = vsyncadd [#allocation6], %s27
      %s29 = sshll.u32 [#allocation5], 4
      %s30 = int_to_ptr.vmem [resolvable:$true] %s29
      %35 = dma.hbm_to_vmem [thread:$0]  %s1, 128, %s30, [#allocation6], 64, 64, 4
    $region9: #{tpu_custom_call.1} parent=1 // pred_fallthru
      _
    // Predicated region
    $region10: #{tpu_custom_call.1} parent=1 // pred_check
      _
    $region11: #{tpu_custom_call.1} parent=1 // pred_check_branch
      %37 = sbr.rel (0) target = $region13
    $region12: #{tpu_custom_call.1} parent=1 // pred_region
      %s39 = ssub.s32 2048, 2048
      %40 = vsyncadd [#allocation6], %s39
      %s41 = sshll.u32 [#allocation7], 4
      %s42 = int_to_ptr.vmem [resolvable:$true] %s41
      %47 = dma.hbm_to_vmem [thread:$0]  %s2, 2048, %s42, [#allocation6], 64, 64, 4
    $region13: #{tpu_custom_call.1} parent=1 // pred_fallthru
      _
    // Predicated region
    $region14: #{tpu_custom_call.1} parent=1 // pred_check
      _
    $region15: #{tpu_custom_call.1} parent=1 // pred_check_branch
      %49 = sbr.rel (0) target = $region17
    $region16: #{tpu_custom_call.1} parent=1 // pred_region
      _
    $region17: #{tpu_custom_call.1} parent=1 // pred_fallthru
      _
    // Predicated region
    $region18: #{tpu_custom_call.1} parent=1 // pred_check
      _
    $region19: #{tpu_custom_call.1} parent=1 // pred_check_branch
      %51 = sbr.rel (0) target = $region21
    $region20: #{tpu_custom_call.1} parent=1 // pred_region
      %52 = dma.done [#allocation3], 128
    $region21: #{tpu_custom_call.1} parent=1 // pred_fallthru
      _
    // Predicated region
    $region22: #{tpu_custom_call.1} parent=1 // pred_check
      _
    $region23: #{tpu_custom_call.1} parent=1 // pred_check_branch
      %54 = sbr.rel (0) target = $region25
    $region24: #{tpu_custom_call.1} parent=1 // pred_region
      %55 = dma.done [#allocation6], 128
    $region25: #{tpu_custom_call.1} parent=1 // pred_fallthru
      _
    // Predicated region
    $region26: #{tpu_custom_call.1} parent=1 // pred_check
      _
    $region27: #{tpu_custom_call.1} parent=1 // pred_check_branch
      %57 = sbr.rel (0) target = $region29
    $region28: #{tpu_custom_call.1} parent=1 // pred_region
      %58 = dma.done [#allocation6], 2048
    $region29: #{tpu_custom_call.1} parent=1 // pred_fallthru
      _
    %v60 = vld [vmem:[#allocation2] sm:$0xf]
    %v61 = vld [vmem:[#allocation2 + $0x4] sm:$0xf]
    %v62 = vld [vmem:[%s3] sm:$0xff]
    %v63 = vld [vmem:[#allocation5] sm:$0xf]
    %v64 = vld [vmem:[#allocation5 + $0x4] sm:$0xf]
    %v65 = vlaneseq
    %v66 = vshrl.u32 %v65, 7
    %v67 = vsub.s32 0, %v66
    %v68 = vrot.slane %v62, %v67
    %v71 = vunpack.c.l.b16 %v60
    %v72 = vunpack.c.l.b16 %v61
    %v73 = vpack.c.b16 %v72, %v71
    %v76 = vunpack.c.l.b16 %v63
    %v77 = vunpack.c.l.b16 %v64
    %v78 = vpack.c.b16 %v77, %v76
    %vm80 = vcmask 130048
    %v82 = vsel %vm80, %v73, 0
    %84 = vmatprep.subr.bf16.mxu0 0
    %85 = vmatpush1.bf16.msra.mxu0 %v78
    %86 = vmatprep.subr.bf16.mxu0 0
    %87 = vmatpush1.bf16.msra.mxu0 0
    %88 = vmatprep.subr.bf16.mxu0 0
    %89 = vmatpush1.bf16.msra.mxu0 0
    %90 = vmatprep.subr.bf16.mxu0 0
    %91 = vmatpush1.bf16.msra.mxu0 0
    %92 = vmatprep.subr.bf16.mxu0 0
    %93 = vmatpush1.bf16.msra.mxu0 0
    %94 = vmatprep.subr.bf16.mxu0 0
    %95 = vmatpush1.bf16.msra.mxu0 0
    %96 = vmatprep.subr.bf16.mxu0 0
    %97 = vmatpush1.bf16.msra.mxu0 0
    %98 = vmatprep.subr.bf16.mxu0 0
    %99 = vmatpush1.bf16.msra.mxu0 0
    %100 = vmatprep.subr.bf16.mxu0 0
    %101 = vmatpush1.bf16.msra.mxu0 0
    %102 = vmatprep.subr.bf16.mxu0 0
    %103 = vmatpush1.bf16.msra.mxu0 0
    %104 = vmatprep.subr.bf16.mxu0 0
    %105 = vmatpush1.bf16.msra.mxu0 0
    %106 = vmatprep.subr.bf16.mxu0 0
    %107 = vmatpush1.bf16.msra.mxu0 0
    %108 = vmatprep.subr.bf16.mxu0 0
    %109 = vmatpush1.bf16.msra.mxu0 0
    %110 = vmatprep.subr.bf16.mxu0 0
    %111 = vmatpush1.bf16.msra.mxu0 0
    %112 = vmatprep.subr.bf16.mxu0 0
    %113 = vmatpush1.bf16.msra.mxu0 0
    %114 = vmatprep.subr.bf16.mxu0 0
    %115 = vmatpush1.bf16.msra.mxu0 0
    %116 = vmatprep.mubr.bf16.mxu0 0
    %117 = vmatmul.mubr.bf16.gmra.mrb[0].mxu0 %v82
    %v118 = vpop.f32.mrb[0].mxu0
    %v119 = vadd.f32 %v68, %v118
    %v120 = vpop.f32.mrb[0].mxu0
    %v121 = vpop.f32.mrb[0].mxu0
    %v122 = vadd.f32 %v68, %v121
    %v123 = vpop.f32.mrb[0].mxu0
    %124 = vdwg.mxu0
    %v125 = vmax.f32 %v119, 0.0
    %v126 = vmax.f32 %v122, 0.0
    %v127 = vpack.c.bf16 %v126, %v125
    %v128 = vld [vmem:[#allocation7] sm:$0xf]
    %v129 = vld [vmem:[#allocation7 + $0x4] sm:$0xf]
    %v130 = vld [vmem:[#allocation7 + $0x8] sm:$0xf]
    %v131 = vld [vmem:[#allocation7 + $0xc] sm:$0xf]
    %v132 = vld [vmem:[#allocation7 + $0x10] sm:$0xf]
    %v133 = vld [vmem:[#allocation7 + $0x14] sm:$0xf]
    %v134 = vld [vmem:[#allocation7 + $0x18] sm:$0xf]
    %v135 = vld [vmem:[#allocation7 + $0x1c] sm:$0xf]
    %v136 = vld [vmem:[#allocation7 + $0x20] sm:$0xf]
    %v137 = vld [vmem:[#allocation7 + $0x24] sm:$0xf]
    %v138 = vld [vmem:[#allocation7 + $0x28] sm:$0xf]
    %v139 = vld [vmem:[#allocation7 + $0x2c] sm:$0xf]
    %v140 = vld [vmem:[#allocation7 + $0x30] sm:$0xf]
    %v141 = vld [vmem:[#allocation7 + $0x34] sm:$0xf]
    %v142 = vld [vmem:[#allocation7 + $0x38] sm:$0xf]
    %v143 = vld [vmem:[#allocation7 + $0x3c] sm:$0xf]
    %v144 = vlaneseq
    %v145 = vshrl.u32 %v144, 7
    %v146 = vsub.s32 1, %v145
    %v147 = vrot.slane %v62, %v146
    %v164 = vunpack.c.l.b16 %v128
    %v165 = vunpack.c.l.b16 %v129
    %v166 = vunpack.c.l.b16 %v130
    %v167 = vunpack.c.l.b16 %v131
    %v168 = vunpack.c.l.b16 %v132
    %v169 = vunpack.c.l.b16 %v133
    %v170 = vunpack.c.l.b16 %v134
    %v171 = vunpack.c.l.b16 %v135
    %v172 = vunpack.c.l.b16 %v136
    %v173 = vunpack.c.l.b16 %v137
    %v174 = vunpack.c.l.b16 %v138
    %v175 = vunpack.c.l.b16 %v139
    %v176 = vunpack.c.l.b16 %v140
    %v177 = vunpack.c.l.b16 %v141
    %v178 = vunpack.c.l.b16 %v142
    %v179 = vunpack.c.l.b16 %v143
    %v180 = vpack.c.b16 %v165, %v164
    %v181 = vpack.c.b16 %v167, %v166
    %v182 = vpack.c.b16 %v169, %v168
    %v183 = vpack.c.b16 %v171, %v170
    %v184 = vpack.c.b16 %v173, %v172
    %v185 = vpack.c.b16 %v175, %v174
    %v186 = vpack.c.b16 %v177, %v176
    %v187 = vpack.c.b16 %v179, %v178
    %196 = vmatprep.subr.bf16.mxu0 0
    %197 = vmatpush1.bf16.msra.mxu0 %v180
    %198 = vmatprep.subr.bf16.mxu0 0
    %199 = vmatpush1.bf16.msra.mxu0 %v181
    %200 = vmatprep.subr.bf16.mxu0 0
    %201 = vmatpush1.bf16.msra.mxu0 %v182
    %202 = vmatprep.subr.bf16.mxu0 0
    %203 = vmatpush1.bf16.msra.mxu0 %v183
    %204 = vmatprep.subr.bf16.mxu0 0
    %205 = vmatpush1.bf16.msra.mxu0 %v184
    %206 = vmatprep.subr.bf16.mxu0 0
    %207 = vmatpush1.bf16.msra.mxu0 %v185
    %208 = vmatprep.subr.bf16.mxu0 0
    %209 = vmatpush1.bf16.msra.mxu0 %v186
    %210 = vmatprep.subr.bf16.mxu0 0
    %211 = vmatpush1.bf16.msra.mxu0 %v187
    %212 = vmatprep.subr.bf16.mxu0 0
    %213 = vmatpush1.bf16.msra.mxu0 0
    %214 = vmatprep.subr.bf16.mxu0 0
    %215 = vmatpush1.bf16.msra.mxu0 0
    %216 = vmatprep.subr.bf16.mxu0 0
    %217 = vmatpush1.bf16.msra.mxu0 0
    %218 = vmatprep.subr.bf16.mxu0 0
    %219 = vmatpush1.bf16.msra.mxu0 0
    %220 = vmatprep.subr.bf16.mxu0 0
    %221 = vmatpush1.bf16.msra.mxu0 0
    %222 = vmatprep.subr.bf16.mxu0 0
    %223 = vmatpush1.bf16.msra.mxu0 0
    %224 = vmatprep.subr.bf16.mxu0 0
    %225 = vmatpush1.bf16.msra.mxu0 0
    %226 = vmatprep.subr.bf16.mxu0 0
    %227 = vmatpush1.bf16.msra.mxu0 0
    %228 = vmatprep.mubr.bf16.mxu0 0
    %229 = vmatmul.mubr.bf16.gmra.mrb[0].mxu0 %v127
    %v230 = vpop.f32.mrb[0].mxu0
    %v231 = vadd.f32 %v147, %v230
    %v232 = vpop.f32.mrb[0].mxu0
    %v233 = vpop.f32.mrb[0].mxu0
    %v234 = vadd.f32 %v147, %v233
    %v235 = vpop.f32.mrb[0].mxu0
    %236 = vdwg.mxu0
    %v237 = vmax.f32 %v231, 0.0
    %v238 = vmax.f32 %v234, 0.0
    %v239 = vpack.c.bf16 %v238, %v237
    %s240 = scalar_lea.vmem [#allocation7], 64
    %v241 = vld [vmem:[%s240] sm:$0xf]
    %v242 = vld [vmem:[%s240 + $0x4] sm:$0xf]
    %v243 = vld [vmem:[%s240 + $0x8] sm:$0xf]
    %v244 = vld [vmem:[%s240 + $0xc] sm:$0xf]
    %v245 = vld [vmem:[%s240 + $0x10] sm:$0xf]
    %v246 = vld [vmem:[%s240 + $0x14] sm:$0xf]
    %v247 = vld [vmem:[%s240 + $0x18] sm:$0xf]
    %v248 = vld [vmem:[%s240 + $0x1c] sm:$0xf]
    %v249 = vld [vmem:[%s240 + $0x20] sm:$0xf]
    %v250 = vld [vmem:[%s240 + $0x24] sm:$0xf]
    %v251 = vld [vmem:[%s240 + $0x28] sm:$0xf]
    %v252 = vld [vmem:[%s240 + $0x2c] sm:$0xf]
    %v253 = vld [vmem:[%s240 + $0x30] sm:$0xf]
    %v254 = vld [vmem:[%s240 + $0x34] sm:$0xf]
    %v255 = vld [vmem:[%s240 + $0x38] sm:$0xf]
    %v256 = vld [vmem:[%s240 + $0x3c] sm:$0xf]
    %v257 = vlaneseq
    %v258 = vshrl.u32 %v257, 7
    %v259 = vsub.s32 2, %v258
    %v260 = vrot.slane %v62, %v259
    %v277 = vunpack.c.l.b16 %v241
    %v278 = vunpack.c.l.b16 %v242
    %v279 = vunpack.c.l.b16 %v243
    %v280 = vunpack.c.l.b16 %v244
    %v281 = vunpack.c.l.b16 %v245
    %v282 = vunpack.c.l.b16 %v246
    %v283 = vunpack.c.l.b16 %v247
    %v284 = vunpack.c.l.b16 %v248
    %v285 = vunpack.c.l.b16 %v249
    %v286 = vunpack.c.l.b16 %v250
    %v287 = vunpack.c.l.b16 %v251
    %v288 = vunpack.c.l.b16 %v252
    %v289 = vunpack.c.l.b16 %v253
    %v290 = vunpack.c.l.b16 %v254
    %v291 = vunpack.c.l.b16 %v255
    %v292 = vunpack.c.l.b16 %v256
    %v293 = vpack.c.b16 %v278, %v277
    %v294 = vpack.c.b16 %v280, %v279
    %v295 = vpack.c.b16 %v282, %v281
    %v296 = vpack.c.b16 %v284, %v283
    %v297 = vpack.c.b16 %v286, %v285
    %v298 = vpack.c.b16 %v288, %v287
    %v299 = vpack.c.b16 %v290, %v289
    %v300 = vpack.c.b16 %v292, %v291
    %309 = vmatprep.subr.bf16.mxu0 0
    %310 = vmatpush1.bf16.msra.mxu0 %v293
    %311 = vmatprep.subr.bf16.mxu0 0
    %312 = vmatpush1.bf16.msra.mxu0 %v294
    %313 = vmatprep.subr.bf16.mxu0 0
    %314 = vmatpush1.bf16.msra.mxu0 %v295
    %315 = vmatprep.subr.bf16.mxu0 0
    %316 = vmatpush1.bf16.msra.mxu0 %v296
    %317 = vmatprep.subr.bf16.mxu0 0
    %318 = vmatpush1.bf16.msra.mxu0 %v297
    %319 = vmatprep.subr.bf16.mxu0 0
    %320 = vmatpush1.bf16.msra.mxu0 %v298
    %321 = vmatprep.subr.bf16.mxu0 0
    %322 = vmatpush1.bf16.msra.mxu0 %v299
    %323 = vmatprep.subr.bf16.mxu0 0
    %324 = vmatpush1.bf16.msra.mxu0 %v300
    %325 = vmatprep.subr.bf16.mxu0 0
    %326 = vmatpush1.bf16.msra.mxu0 0
    %327 = vmatprep.subr.bf16.mxu0 0
    %328 = vmatpush1.bf16.msra.mxu0 0
    %329 = vmatprep.subr.bf16.mxu0 0
    %330 = vmatpush1.bf16.msra.mxu0 0
    %331 = vmatprep.subr.bf16.mxu0 0
    %332 = vmatpush1.bf16.msra.mxu0 0
    %333 = vmatprep.subr.bf16.mxu0 0
    %334 = vmatpush1.bf16.msra.mxu0 0
    %335 = vmatprep.subr.bf16.mxu0 0
    %336 = vmatpush1.bf16.msra.mxu0 0
    %337 = vmatprep.subr.bf16.mxu0 0
    %338 = vmatpush1.bf16.msra.mxu0 0
    %339 = vmatprep.subr.bf16.mxu0 0
    %340 = vmatpush1.bf16.msra.mxu0 0
    %341 = vmatprep.mubr.bf16.mxu0 0
    %342 = vmatmul.mubr.bf16.gmra.mrb[0].mxu0 %v239
    %v343 = vpop.f32.mrb[0].mxu0
    %v344 = vadd.f32 %v260, %v343
    %v345 = vpop.f32.mrb[0].mxu0
    %v346 = vpop.f32.mrb[0].mxu0
    %v347 = vadd.f32 %v260, %v346
    %v348 = vpop.f32.mrb[0].mxu0
    %349 = vdwg.mxu0
    %v350 = vlaneseq
    %v351 = vand.u32 %v350, 127
    %vm352 = vcmp.lt.s32.totalorder %v351, 2
    %vm353 = vcmp.eq.s32.totalorder %v351, 2
    %v354 = vsel %vm352, %v344, -1e+30
    %v355 = vsel %vm352, %v347, -1e+30
    %356 = vmax.xlane.f32.xlu0 %v354
    %v357 = vpop.xlane.xlu0 %356
    %358 = vmax.xlane.f32.xlu0 %v355
    %v359 = vpop.xlane.xlu0 %358
    %v360 = vsub.f32 %v354, %v357
    %v361 = vsub.f32 %v355, %v359
    %v362 = vmul.f32 %v360, 1.442695
    %v363 = vpow.pop %v362
    %v364 = vmul.f32 %v361, 1.442695
    %v365 = vpow.pop %v364
    %v366 = vsel %vm352, %v363, 0.0
    %v367 = vsel %vm352, %v365, 0.0
    %368 = vadd.xlane.f32.xlu0 %v366
    %v369 = vpop.xlane.xlu0 %368
    %370 = vadd.xlane.f32.xlu0 %v367
    %v371 = vpop.xlane.xlu0 %370
    %v372 = vrcp.pop %v369
    %v373 = vrcp.pop %v371
    %v374 = vmul.f32 %v366, %v372
    %v375 = vmul.f32 %v367, %v373
    %v376 = vsel %vm353, %v344, 0.0
    %v377 = vsel %vm353, %v347, 0.0
    %378 = vadd.xlane.f32.xlu0 %v376
    %v379 = vpop.xlane.xlu0 %378
    %380 = vadd.xlane.f32.xlu0 %v377
    %v381 = vpop.xlane.xlu0 %380
    %v382 = vtanh.pop %v379
    %v383 = vtanh.pop %v381
    %v384 = vsel %vm353, %v382, 0.0
    %v385 = vsel %vm353, %v383, 0.0
    %v386 = vadd.f32 %v374, %v384
    %v387 = vadd.f32 %v375, %v385
    %v388 = vpack.c.bf16 %v387, %v386
    %v390 = vunpack.c.l.b16 %v388
    %v391 = vunpack.c.h.b16 %v388
    %v392 = vpack.c.b16 %v390, %v390
    %v393 = vpack.c.b16 %v391, %v391
    %396 = vst [vmem:[#allocation8] sm:$0xf] %v392
    %397 = vst [vmem:[#allocation8 + $0x4] sm:$0xf] %v393
    // Predicated region
    $region30: #{tpu_custom_call.1} parent=1 // pred_check
      _
    $region31: #{tpu_custom_call.1} parent=1 // pred_check_branch
      %399 = sbr.rel (0) target = $region33
    $region32: #{tpu_custom_call.1} parent=1 // pred_region
      %s401 = ssub.s32 128, 128
      %402 = vsyncadd [#allocation4], %s401
      %s403 = sshll.u32 [#allocation8], 4
      %s404 = int_to_ptr.vmem [resolvable:$true] %s403
      %409 = dma.vmem_to_hbm [thread:$0]  %s404, 128, %s4, [#allocation4], 64, 64, 4
    $region33: #{tpu_custom_call.1} parent=1 // pred_fallthru
      _
    // Predicated region
    $region34: #{tpu_custom_call.1} parent=1 // pred_check
      _
    $region35: #{tpu_custom_call.1} parent=1 // pred_check_branch
      %411 = sbr.rel (0) target = $region37
    $region36: #{tpu_custom_call.1} parent=1 // pred_region
      %412 = dma.done [#allocation4], 128
    $region37: #{tpu_custom_call.1} parent=1 // pred_fallthru
      _
    %413 = vsyncpa [#allocation3], 1
    %414 = vsyncpa [#allocation6], 1
    %415 = vsyncpa [#allocation4], 1

</llo_original>
